<compile_context>
chip_gen: v5e
topology: v5e:2x2
jax: 0.10.0
libtpu: 0.0.40
codegen_flags: <defaults>
</compile_context>

<pallas_src>
import math
import functools

import jax
import jax.numpy as jnp
from jax.experimental import pallas as pl
from jax.experimental.pallas import tpu as pltpu


# ---------------------------------------------------------------------------
# Kernels
# ---------------------------------------------------------------------------
def _pe_add_kernel(x_ref, pe_ref, o_ref):
    # x_ref: (TS, B*D), pe_ref: (TS, B*D) (already tiled over batch in wrapper)
    o_ref[...] = (x_ref[...] + pe_ref[...]).astype(o_ref.dtype)


def _pe_add_dropout_kernel(x_ref, pe_ref, bits_ref, o_ref, *, threshold, scale):
    # Training-mode path: add + inverted dropout via an integer threshold on
    # raw uint32 random bits (keep prob = 1 - p), then scale kept values by 1/(1-p).
    y = (x_ref[...] + pe_ref[...]) * jnp.asarray(scale, x_ref.dtype)
    keep = bits_ref[...] >= jnp.uint32(threshold)
    o_ref[...] = jnp.where(keep, y, jnp.zeros_like(y)).astype(o_ref.dtype)


# ---------------------------------------------------------------------------
# Parameter (buffer) construction — same formula as the PyTorch module.
# ---------------------------------------------------------------------------
def make_positional_encoding_buffer(d_model: int, max_len: int = 5000,
                                    dtype=jnp.float32) -> jax.Array:
    position = jnp.arange(max_len, dtype=jnp.float32)[:, None]          # (max_len, 1)
    div_term = jnp.exp(jnp.arange(0, d_model, 2, dtype=jnp.float32)
                       * (-math.log(10000.0) / d_model))                # (d_model/2,)
    ang = position * div_term                                           # (max_len, d_model/2)
    pe = jnp.zeros((max_len, d_model), dtype=jnp.float32)
    pe = pe.at[:, 0::2].set(jnp.sin(ang))
    pe = pe.at[:, 1::2].set(jnp.cos(ang))
    # unsqueeze(0).transpose(0, 1) in torch -> (max_len, 1, d_model)
    return pe[:, None, :].astype(dtype)


# ---------------------------------------------------------------------------
# Tiling helper
# ---------------------------------------------------------------------------
def _choose_seq_tile(S: int, stream_row_bytes: int,
                     budget_bytes: int = 32 << 20, max_tile: int = 2048) -> int:
    """Largest seq tile whose double-buffered working set fits the VMEM budget."""
    ts = budget_bytes // (2 * max(stream_row_bytes, 1))   # 2x for double buffering
    ts = min(ts, max_tile)
    if ts >= S:
        return S                     # full-extent block is always a legal shape
    return max(8, (ts // 8) * 8)     # keep sublane-aligned (multiple of 8)


# ---------------------------------------------------------------------------
# Wrapper
# ---------------------------------------------------------------------------
def positional_encoding_forward(x: jax.Array, pe: jax.Array, *,
                                dropout_p: float = 0.1,
                                training: bool = False,
                                rng_key: jax.Array | None = None) -> jax.Array:
    """x: (S, B, D) seq-first. pe: (max_len, 1, D). Returns (S, B, D)."""
    S, B, D = x.shape
    BD = B * D
    itemsize = jnp.dtype(x.dtype).itemsize

    # Lane-dense slabs: collapse (B, D) -> B*D. pe is tiny, so tiling it over the
    # batch axis in the wrapper is cheap and gives the kernel a full-width add.
    x2 = x.reshape(S, BD)
    pe2 = jnp.tile(pe[:S, 0, :].astype(x.dtype), (1, B))                # (S, B*D)

    out_shape = jax.ShapeDtypeStruct((S, BD), x.dtype)
    vmem_limit = 48 << 20   # safe on v7x's 64 MiB VMEM; plenty of headroom on v5e/v6e

    if training and dropout_p > 0.0:
        if rng_key is None:
            rng_key = jax.random.PRNGKey(0)
        # TODO(synk): in-kernel pltpu.prng_random_bits would halve HBM traffic for
        # the dropout path, but it has no CPU/interpret lowering; generate the
        # random bits with jax.random and stream them through the kernel instead.
        bits = jax.random.bits(rng_key, (S, BD), dtype=jnp.uint32)
        threshold = min(int(round(dropout_p * 2.0**32)), 2**32 - 1)
        scale = 1.0 / (1.0 - dropout_p)

        stream_row_bytes = 3 * BD * itemsize + BD * 4   # x + pe + out + bits per row
        TS = _choose_seq_tile(S, stream_row_bytes)
        grid = (pl.cdiv(S, TS),)

        kernel = functools.partial(_pe_add_dropout_kernel,
                                   threshold=threshold, scale=scale)
        out2 = pl.pallas_call(
            kernel,
            out_shape=out_shape,
            grid=grid,
            in_specs=[
                pl.BlockSpec((TS, BD), lambda i: (i, 0)),   # x
                pl.BlockSpec((TS, BD), lambda i: (i, 0)),   # pe
                pl.BlockSpec((TS, BD), lambda i: (i, 0)),   # random bits
            ],
            out_specs=pl.BlockSpec((TS, BD), lambda i: (i, 0)),
            compiler_params=pltpu.CompilerParams(
                dimension_semantics=("parallel",),
                vmem_limit_bytes=vmem_limit),
        )(x2, pe2, bits)
        return out2.reshape(S, B, D)

    # Eval mode: dropout is identity (matches module.eval()).
    stream_row_bytes = 3 * BD * itemsize                   # x + pe + out per row
    TS = _choose_seq_tile(S, stream_row_bytes)
    grid = (pl.cdiv(S, TS),)

    out2 = pl.pallas_call(
        _pe_add_kernel,
        out_shape=out_shape,
        grid=grid,
        in_specs=[
            pl.BlockSpec((TS, BD), lambda i: (i, 0)),
            pl.BlockSpec((TS, BD), lambda i: (i, 0)),
        ],
        out_specs=pl.BlockSpec((TS, BD), lambda i: (i, 0)),
        compiler_params=pltpu.CompilerParams(
            dimension_semantics=("parallel",),
            vmem_limit_bytes=vmem_limit),
    )(x2, pe2)
    return out2.reshape(S, B, D)


# ---------------------------------------------------------------------------
# Main
# ---------------------------------------------------------------------------
if __name__ == "__main__":
    seq_len, batch, d_model = 8, 2, 32
    max_len = 64  # small but > seq_len; formula identical to the max_len=5000 version
    p = 0.1

    key = jax.random.PRNGKey(0)
    kx, kdrop = jax.random.split(key)
    x = jax.random.normal(kx, (seq_len, batch, d_model), dtype=jnp.float32)

    pe = make_positional_encoding_buffer(d_model, max_len=max_len)
    ref = x + pe[:seq_len]                                   # plain-JAX reference

    # Eval-mode forward (deterministic).
    out = positional_encoding_forward(x, pe, dropout_p=p, training=False)
    out = jax.block_until_ready(out)
    assert out.shape == (seq_len, batch, d_model)
    assert jnp.allclose(out, ref, atol=1e-6, rtol=1e-6), "eval mismatch vs reference"

    # Training-mode forward (inverted dropout).
    # TODO(synk): torch's RNG stream cannot be matched bit-exactly; dropout
    # statistics (keep prob 1-p, scale 1/(1-p)) are equivalent.
    out_train = positional_encoding_forward(x, pe, dropout_p=p, training=True,
                                            rng_key=kdrop)
    out_train = jax.block_until_ready(out_train)
    assert out_train.shape == (seq_len, batch, d_model)
    # Every surviving element must equal (x + pe) / (1 - p); dropped elements are 0.
    ref_scaled = ref / (1.0 - p)
    kept = out_train != 0.0
    assert jnp.allclose(jnp.where(kept, out_train, 0.0),
                        jnp.where(kept, ref_scaled, 0.0),
                        atol=1e-5, rtol=1e-5), "dropout-kept values mismatch"

    print("KERNEL_OK")
</pallas_src>

<mosaic_0001>
module attributes {stable_mosaic.version = 11 : i64} {
  func.func @_pe_add_kernel(%arg0: i32, %arg1: memref<8x64xf32, #tpu.memory_space<vmem>>, %arg2: memref<8x64xf32, #tpu.memory_space<vmem>>, %arg3: memref<8x64xf32, #tpu.memory_space<vmem>>) attributes {dimension_semantics = [#tpu.dimension_semantics<parallel>], iteration_bounds = array<i64: 1>, scalar_prefetch = 0 : i64, scratch_operands = 0 : i64, tpu.core_type = #tpu.core_type<tc>, window_params = [{transform_indices = @transform_0, window_bounds = array<i64: 8, 64>}, {transform_indices = @transform_1, window_bounds = array<i64: 8, 64>}, {transform_indices = @transform_2, window_bounds = array<i64: 8, 64>}]} {
    %c0 = arith.constant 0 : index
    %c0_0 = arith.constant 0 : index
    %0 = vector.load %arg1[%c0, %c0_0] : memref<8x64xf32, #tpu.memory_space<vmem>>, vector<8x64xf32>
    %c0_1 = arith.constant 0 : index
    %c0_2 = arith.constant 0 : index
    %1 = vector.load %arg2[%c0_1, %c0_2] : memref<8x64xf32, #tpu.memory_space<vmem>>, vector<8x64xf32>
    %2 = arith.addf %0, %1 : vector<8x64xf32>
    %c0_3 = arith.constant 0 : index
    %c0_4 = arith.constant 0 : index
    %3 = vector.load %arg3[%c0_3, %c0_4] : memref<8x64xf32, #tpu.memory_space<vmem>>, vector<8x64xf32>
    tpu.vector_store %arg3[%c0_3, %c0_4], %2 {strides = array<i32>} : memref<8x64xf32, #tpu.memory_space<vmem>>, vector<8x64xf32>,
    return
  }
  func.func @transform_0(%arg0: i32) -> (i32, i32) {
    %c0_i32 = arith.constant 0 : i32
    %c0_i32_0 = arith.constant 0 : i32
    return %arg0, %c0_i32 : i32, i32
  }
  func.func @transform_1(%arg0: i32) -> (i32, i32) {
    %c0_i32 = arith.constant 0 : i32
    %c0_i32_0 = arith.constant 0 : i32
    return %arg0, %c0_i32 : i32, i32
  }
  func.func @transform_2(%arg0: i32) -> (i32, i32) {
    %c0_i32 = arith.constant 0 : i32
    %c0_i32_0 = arith.constant 0 : i32
    return %arg0, %c0_i32 : i32, i32
  }
}

</mosaic_0001>

<llo_original>
// kernel: tpu_custom_call.1
$region0: #{tpu_custom_call.1}
  #allocation0 [shape = 'u32[]', space=smem, size = 0x4, offset = 0x4, fixed_abs, tag = 'smem constant byte address 0x4 - core index']
  #allocation1 [shape = 'u32[72,128]{1,0:T(1,128)}', space=vmem, size = 0x9000, scoped, tag = 'internal scratch']
  %s0 = inlined_call_operand.hbm [shape: f32[8,64], index: 0, kind: input, shape index: {}]
  %s1 = inlined_call_operand.hbm [shape: f32[8,64], index: 1, kind: input, shape index: {}]
  %s2 = inlined_call_operand.hbm [shape: f32[8,64], index: 2, kind: output, shape index: {}]
  %s3 = sld [smem:[#allocation0]]
  $region26: #{tpu_custom_call.1} parent=0
    _
  %s5 = ssub.s32 1, %s3
  %s6 = scalar_select 0, %s5, %s3
  $region1: #{tpu_custom_call.1} parent=0
    #allocation2 [shape = 'u8[4096]{0}', space=vmem, size = 0x1000, scoped, tag = 'input window, operand 0, single buffered']
    #allocation3 [shape = 's32[1]{0}', space=sflag, size = 0x4, scoped, tag = 'scoped memory for tpu_custom_call.1']
    #allocation4 [shape = 's32[1]{0}', space=sflag, size = 0x4, scoped, tag = 'scoped memory for tpu_custom_call.1']
    #allocation5 [shape = 'u8[4096]{0}', space=vmem, size = 0x1000, scoped, tag = 'input window, operand 1, single buffered']
    #allocation6 [shape = 's32[1]{0}', space=sflag, size = 0x4, scoped, tag = 'scoped memory for tpu_custom_call.1']
    #allocation7 [shape = 'u8[4096]{0}', space=vmem, size = 0x1000, scoped, tag = 'output window, operand 0, single buffered']
    %7 = vsyncpa [#allocation3], 0
    %8 = vsyncpa [#allocation6], 0
    %9 = vsyncpa [#allocation4], 0
    // Predicated region
    $region2: #{tpu_custom_call.1} parent=1 // pred_check
      _
    $region3: #{tpu_custom_call.1} parent=1 // pred_check_branch
      %11 = sbr.rel (0) target = $region5
    $region4: #{tpu_custom_call.1} parent=1 // pred_region
      %13 = vsyncadd [#allocation3], 0
      %s15 = sshll.u32 %s0, 4
      %s16 = int_to_ptr.hbm [resolvable:$true] %s15
      %s17 = sshll.u32 [#allocation2], 4
      %s18 = int_to_ptr.vmem [resolvable:$true] %s17
      %20 = dma.hbm_to_vmem [thread:$0]  %s16, 128, %s18, [#allocation3]
    $region5: #{tpu_custom_call.1} parent=1 // pred_fallthru
      _
    // Predicated region
    $region6: #{tpu_custom_call.1} parent=1 // pred_check
      _
    $region7: #{tpu_custom_call.1} parent=1 // pred_check_branch
      %22 = sbr.rel (0) target = $region9
    $region8: #{tpu_custom_call.1} parent=1 // pred_region
      %24 = vsyncadd [#allocation6], 0
      %s26 = sshll.u32 %s1, 4
      %s27 = int_to_ptr.hbm [resolvable:$true] %s26
      %s28 = sshll.u32 [#allocation5], 4
      %s29 = int_to_ptr.vmem [resolvable:$true] %s28
      %31 = dma.hbm_to_vmem [thread:$0]  %s27, 128, %s29, [#allocation6]
    $region9: #{tpu_custom_call.1} parent=1 // pred_fallthru
      _
    // Predicated region
    $region10: #{tpu_custom_call.1} parent=1 // pred_check
      _
    $region11: #{tpu_custom_call.1} parent=1 // pred_check_branch
      %33 = sbr.rel (0) target = $region13
    $region12: #{tpu_custom_call.1} parent=1 // pred_region
      %35 = dma.done [#allocation3], 128
    $region13: #{tpu_custom_call.1} parent=1 // pred_fallthru
      _
    // Predicated region
    $region14: #{tpu_custom_call.1} parent=1 // pred_check
      _
    $region15: #{tpu_custom_call.1} parent=1 // pred_check_branch
      %37 = sbr.rel (0) target = $region17
    $region16: #{tpu_custom_call.1} parent=1 // pred_region
      %39 = dma.done [#allocation6], 128
    $region17: #{tpu_custom_call.1} parent=1 // pred_fallthru
      _
    %v40 = vld [vmem:[#allocation2] sm:$0xff]
    %v41 = vld [vmem:[#allocation5] sm:$0xff]
    %v42 = vadd.f32 %v40, %v41
    %vm43 = vcmask 523264
    %44 = vst.msk [vmem:[#allocation7] sm:$0xff] %vm43, %v42
    // Predicated region
    $region18: #{tpu_custom_call.1} parent=1 // pred_check
      _
    $region19: #{tpu_custom_call.1} parent=1 // pred_check_branch
      %46 = sbr.rel (0) target = $region21
    $region20: #{tpu_custom_call.1} parent=1 // pred_region
      %48 = vsyncadd [#allocation4], 0
      %s50 = sshll.u32 [#allocation7], 4
      %s51 = int_to_ptr.vmem [resolvable:$true] %s50
      %s52 = sshll.u32 %s2, 4
      %s53 = int_to_ptr.hbm [resolvable:$true] %s52
      %55 = dma.vmem_to_hbm [thread:$0]  %s51, 128, %s53, [#allocation4]
    $region21: #{tpu_custom_call.1} parent=1 // pred_fallthru
      _
    // Predicated region
    $region22: #{tpu_custom_call.1} parent=1 // pred_check
      _
    $region23: #{tpu_custom_call.1} parent=1 // pred_check_branch
      %57 = sbr.rel (0) target = $region25
    $region24: #{tpu_custom_call.1} parent=1 // pred_region
      %59 = dma.done [#allocation4], 128
    $region25: #{tpu_custom_call.1} parent=1 // pred_fallthru
      _
    %60 = vsyncpa [#allocation3], 1
    %61 = vsyncpa [#allocation6], 1
    %62 = vsyncpa [#allocation4], 1

</llo_original>
